<compile_context>
chip_gen: v7x
topology: tpu7x:2x2x1
jax: 0.10.0
libtpu: 0.0.40
codegen_flags: <defaults>
</compile_context>

<pallas_src>
import math

import jax
import jax.numpy as jnp
from jax.experimental import pallas as pl
from jax.experimental.pallas import tpu as pltpu


NEG_SLOPE = 0.01   # nn.LeakyReLU default
LANE = 128         # TPU lane width; padded hidden dims are multiples of this


def _round_up(n, m):
    return ((n + m - 1) // m) * m


def _resident(i):
    # Constant block index -> weight/bias tile stays in VMEM across all batch tiles.
    return (0, 0)


# ----------------------------------------------------------------------------
# Kernel: full BitPred forward on one (tb, ci) batch tile.
# ----------------------------------------------------------------------------
def _bitpred_kernel(x_ref,
                    w1, b1, w2, b2, w3, b3, w4, b4, w5, b5, w6, b6, w7, b7,
                    o_ref):
    def leaky(v):
        return jnp.where(v >= 0, v, NEG_SLOPE * v)

    def dense(h, w_ref, b_ref):
        # Matmul operands in the weight's dtype (bf16 by default for layers
        # 2-7, f32 for layer 1); f32 MXU accumulation; bias add in f32.
        return jnp.dot(h.astype(w_ref.dtype), w_ref[...],
                       preferred_element_type=jnp.float32) + b_ref[...]

    h = x_ref[...].astype(jnp.float32)           # (tb, ci)   -- ci unpadded
    h = leaky(dense(h, w1, b1))                   # (tb, 128)
    h = leaky(dense(h, w2, b2))
    h = leaky(dense(h, w3, b3))
    h = leaky(dense(h, w4, b4))
    h = leaky(dense(h, w5, b5))
    h = leaky(dense(h, w6, b6))
    z = dense(h, w7, b7)                          # (tb, 128); only column 0 is real
    z0 = z[:, 0:1]                                # (tb, 1)
    # exp lowers to the EUP slot; exact sigmoid keeps the reference check tight.
    o_ref[...] = (1.0 / (1.0 + jnp.exp(-z0))).astype(o_ref.dtype)


# ----------------------------------------------------------------------------
# Batch tiling: tb % 8 == 0, B_pad % tb == 0, and >=2 grid steps when possible
# so the "parallel" axis shards across both TensorCores on v7x.
# ----------------------------------------------------------------------------
def _batch_tiling(B):
    if B <= 8:
        return 8, 8                       # single tile; nothing worth splitting
    if B <= 2048:
        tb = _round_up((B + 1) // 2, 8)   # two tiles
        return 2 * tb, tb
    tb = 1024                             # large B: 1024-row tiles (MXU stays fed)
    return _round_up(B, tb), tb


@jax.jit
def _bitpred_forward(x, padded_params):
    """x: (B, ci) float; padded_params: list of (w, b) with lane-padded widths."""
    B, ci = x.shape
    B_pad, tb = _batch_tiling(B)

    xb = x.astype(jnp.float32)
    if B_pad != B:
        # Pad only the batch (sublane) axis; the feature axis is consumed unpadded.
        xb = jnp.pad(xb, ((0, B_pad - B), (0, 0)))

    flat = []
    weight_specs = []
    for (w, b) in padded_params:
        flat += [w, b]
        weight_specs += [pl.BlockSpec(w.shape, _resident),
                         pl.BlockSpec(b.shape, _resident)]

    out = pl.pallas_call(
        _bitpred_kernel,
        out_shape=jax.ShapeDtypeStruct((B_pad, 1), jnp.float32),
        grid=(B_pad // tb,),
        in_specs=[pl.BlockSpec((tb, ci), lambda i: (i, 0))] + weight_specs,
        out_specs=pl.BlockSpec((tb, 1), lambda i: (i, 0)),
        compiler_params=pltpu.CompilerParams(
            dimension_semantics=("parallel",)),   # shards batch tiles across TCs on v7x
    )(xb, *flat)

    return out if B_pad == B else out[:B]


# ----------------------------------------------------------------------------
# Parameter construction (PyTorch-style init), then zero-padding to 128 lanes.
# ----------------------------------------------------------------------------
def _init_linear(key, fan_in, fan_out):
    # U(-1/sqrt(fan_in), 1/sqrt(fan_in)) like nn.Linear's default init.
    kw, kb = jax.random.split(key)
    bound = 1.0 / math.sqrt(fan_in)
    w = jax.random.uniform(kw, (fan_in, fan_out), jnp.float32, -bound, bound)
    b = jax.random.uniform(kb, (1, fan_out), jnp.float32, -bound, bound)
    return w, b


def _init_bitpred(key, ci, c2, c3):
    dims = [(ci, c2), (c2, c3), (c3, c3), (c3, c3), (c3, c3), (c3, c3), (c3, 1)]
    keys = jax.random.split(key, len(dims))
    return [_init_linear(k, fi, fo) for k, (fi, fo) in zip(keys, dims)]


def _pad_params(params, matmul_dtype):
    """Zero-pad widths to 128 lanes.  Layer 1 keeps its K (=ci) unpadded and its
    weights in f32 (x arrives unpadded); layers 2+ use `matmul_dtype` operands.
    Biases stay f32.  Zero padding keeps the math identical to the unpadded net."""
    padded = []
    for li, (w, b) in enumerate(params):
        fi, fo = w.shape
        fo_p = _round_up(fo, LANE)
        fi_p = fi if li == 0 else _round_up(fi, LANE)
        w_dt = jnp.float32 if li == 0 else matmul_dtype
        wp = jnp.zeros((fi_p, fo_p), jnp.float32).at[:fi, :fo].set(w).astype(w_dt)
        bp = jnp.zeros((1, fo_p), jnp.float32).at[:, :fo].set(b)
        padded.append((wp, bp))
    return padded


class Predictor:
    """JAX/Pallas port of the PyTorch Predictor module."""

    def __init__(self, reach, key, matmul_dtype=jnp.bfloat16):
        nnb = reach * (reach + 1) * 2 * 3
        keys = jax.random.split(key, 8)
        # self.pred[i] corresponds to bit(7-i); its input dim is nnb + 1 + 2 + i.
        self.input_dims = [nnb + 1 + 2 + i for i in range(8)]
        self.matmul_dtype = matmul_dtype
        self.params = [
            _init_bitpred(keys[i], self.input_dims[i], 96, 64) for i in range(8)
        ]
        # Lane-padded copies consumed by the kernel (built once, reused every call).
        self.padded_params = [_pad_params(p, matmul_dtype) for p in self.params]

    def __call__(self, x, bpos):
        # bpos is a Python int (list dispatch), exactly like the torch module.
        assert x.shape[-1] == self.input_dims[bpos]
        return _bitpred_forward(x, self.padded_params[bpos])


# ----------------------------------------------------------------------------
# Pure-JAX reference (unpadded params) for correctness checking.
# `matmul_dtype` mirrors the kernel's operand dtypes (layer 1 is always f32).
# ----------------------------------------------------------------------------
def _reference(x, params, matmul_dtype=jnp.float32):
    h = x.astype(jnp.float32)
    n = len(params)
    for i, (w, b) in enumerate(params):
        cd = jnp.float32 if i == 0 else matmul_dtype
        h = jnp.dot(h.astype(cd), w.astype(cd),
                    preferred_element_type=jnp.float32) + b
        if i < n - 1:
            h = jnp.where(h >= 0, h, NEG_SLOPE * h)
        else:
            h = jax.nn.sigmoid(h)
    return h


if __name__ == "__main__":
    key = jax.random.PRNGKey(0)
    k_model, k_x1, k_x2 = jax.random.split(key, 3)

    reach = 2            # nnb = 2*3*2*3 = 36
    model = Predictor(reach, k_model)            # bf16 matmul operands (layers 2-7)

    # Case 1: small batch (single tile, grid = 1), bit4: ci = 36 + 3 + 3 = 42.
    bpos = 3
    ci = model.input_dims[bpos]
    x1 = jax.random.normal(k_x1, (8, ci), jnp.float32)
    out1 = jax.block_until_ready(model(x1, bpos))
    assert out1.shape == (8, 1)
    ref1_mixed = _reference(x1, model.params[bpos], model.matmul_dtype)
    ref1_f32 = _reference(x1, model.params[bpos])
    assert jnp.allclose(out1, ref1_mixed, atol=2e-3, rtol=2e-3)
    assert jnp.allclose(out1, ref1_f32, atol=2e-2, rtol=2e-2)

    # Case 2: batch not a tile multiple -> batch pad + 2 "parallel" grid steps.
    bpos2 = 0
    ci2 = model.input_dims[bpos2]                # 39
    x2 = jax.random.normal(k_x2, (24, ci2), jnp.float32)
    out2 = jax.block_until_ready(model(x2, bpos2))
    assert out2.shape == (24, 1)
    ref2_mixed = _reference(x2, model.params[bpos2], model.matmul_dtype)
    assert jnp.allclose(out2, ref2_mixed, atol=2e-3, rtol=2e-3)

    # Exact-f32 path still matches the f32 reference to 1e-5.
    model_f32 = Predictor(reach, k_model, matmul_dtype=jnp.float32)
    out3 = jax.block_until_ready(model_f32(x1, bpos))
    assert jnp.allclose(out3, _reference(x1, model_f32.params[bpos]),
                        atol=1e-5, rtol=1e-5)

    print("KERNEL_OK")
</pallas_src>

<mosaic_0001>
module attributes {stable_mosaic.version = 11 : i64} {
  func.func @_bitpred_kernel(%arg0: i32, %arg1: memref<8x42xf32, #tpu.memory_space<vmem>>, %arg2: memref<42x128xf32, #tpu.memory_space<vmem>>, %arg3: memref<1x128xf32, #tpu.memory_space<vmem>>, %arg4: memref<128x128xbf16, #tpu.memory_space<vmem>>, %arg5: memref<1x128xf32, #tpu.memory_space<vmem>>, %arg6: memref<128x128xbf16, #tpu.memory_space<vmem>>, %arg7: memref<1x128xf32, #tpu.memory_space<vmem>>, %arg8: memref<128x128xbf16, #tpu.memory_space<vmem>>, %arg9: memref<1x128xf32, #tpu.memory_space<vmem>>, %arg10: memref<128x128xbf16, #tpu.memory_space<vmem>>, %arg11: memref<1x128xf32, #tpu.memory_space<vmem>>, %arg12: memref<128x128xbf16, #tpu.memory_space<vmem>>, %arg13: memref<1x128xf32, #tpu.memory_space<vmem>>, %arg14: memref<128x128xbf16, #tpu.memory_space<vmem>>, %arg15: memref<1x128xf32, #tpu.memory_space<vmem>>, %arg16: memref<8x1xf32, #tpu.memory_space<vmem>>) attributes {dimension_semantics = [#tpu.dimension_semantics<parallel>], iteration_bounds = array<i64: 1>, scalar_prefetch = 0 : i64, scratch_operands = 0 : i64, tpu.core_type = #tpu.core_type<tc>, window_params = [{transform_indices = @transform_0, window_bounds = array<i64: 8, 42>}, {pipeline_mode = #tpu.pipeline_mode<synchronous>, transform_indices = @transform_1, window_bounds = array<i64: 42, 128>}, {pipeline_mode = #tpu.pipeline_mode<synchronous>, transform_indices = @transform_2, window_bounds = array<i64: 1, 128>}, {pipeline_mode = #tpu.pipeline_mode<synchronous>, transform_indices = @transform_3, window_bounds = array<i64: 128, 128>}, {pipeline_mode = #tpu.pipeline_mode<synchronous>, transform_indices = @transform_4, window_bounds = array<i64: 1, 128>}, {pipeline_mode = #tpu.pipeline_mode<synchronous>, transform_indices = @transform_5, window_bounds = array<i64: 128, 128>}, {pipeline_mode = #tpu.pipeline_mode<synchronous>, transform_indices = @transform_6, window_bounds = array<i64: 1, 128>}, {pipeline_mode = #tpu.pipeline_mode<synchronous>, transform_indices = @transform_7, window_bounds = array<i64: 128, 128>}, {pipeline_mode = #tpu.pipeline_mode<synchronous>, transform_indices = @transform_8, window_bounds = array<i64: 1, 128>}, {pipeline_mode = #tpu.pipeline_mode<synchronous>, transform_indices = @transform_9, window_bounds = array<i64: 128, 128>}, {pipeline_mode = #tpu.pipeline_mode<synchronous>, transform_indices = @transform_10, window_bounds = array<i64: 1, 128>}, {pipeline_mode = #tpu.pipeline_mode<synchronous>, transform_indices = @transform_11, window_bounds = array<i64: 128, 128>}, {pipeline_mode = #tpu.pipeline_mode<synchronous>, transform_indices = @transform_12, window_bounds = array<i64: 1, 128>}, {pipeline_mode = #tpu.pipeline_mode<synchronous>, transform_indices = @transform_13, window_bounds = array<i64: 128, 128>}, {pipeline_mode = #tpu.pipeline_mode<synchronous>, transform_indices = @transform_14, window_bounds = array<i64: 1, 128>}, {transform_indices = @transform_15, window_bounds = array<i64: 8, 1>}]} {
    %c0 = arith.constant 0 : index
    %c0_0 = arith.constant 0 : index
    %0 = vector.load %arg1[%c0, %c0_0] : memref<8x42xf32, #tpu.memory_space<vmem>>, vector<8x42xf32>
    %c0_1 = arith.constant 0 : index
    %c0_2 = arith.constant 0 : index
    %1 = vector.load %arg2[%c0_1, %c0_2] : memref<42x128xf32, #tpu.memory_space<vmem>>, vector<42x128xf32>
    %cst = arith.constant dense<0.000000e+00> : vector<8x128xf32>
    %2 = tpu.matmul %0, %1, %cst {dimension_numbers = #tpu.dot_dimension_numbers<[1], [0], [0], [1], [0, 0, 1, 1], [], []>} : vector<8x42xf32>, vector<42x128xf32>, vector<8x128xf32> -> vector<8x128xf32>
    %c0_3 = arith.constant 0 : index
    %c0_4 = arith.constant 0 : index
    %3 = vector.load %arg3[%c0_3, %c0_4] : memref<1x128xf32, #tpu.memory_space<vmem>>, vector<1x128xf32>
    %4 = vector.broadcast %3 : vector<1x128xf32> to vector<8x128xf32>
    %5 = arith.addf %2, %4 : vector<8x128xf32>
    %cst_5 = arith.constant 0.000000e+00 : f32
    %6 = vector.broadcast %cst_5 : f32 to vector<8x128xf32>
    %7 = arith.cmpf oge, %5, %6 : vector<8x128xf32>
    %cst_6 = arith.constant 0.00999999977 : f32
    %8 = vector.broadcast %cst_6 : f32 to vector<8x128xf32>
    %9 = arith.mulf %8, %5 : vector<8x128xf32>
    %10 = arith.select %7, %5, %9 : vector<8x128xi1>, vector<8x128xf32>
    %11 = arith.truncf %10 : vector<8x128xf32> to vector<8x128xbf16>
    %c0_7 = arith.constant 0 : index
    %c0_8 = arith.constant 0 : index
    %12 = vector.load %arg4[%c0_7, %c0_8] : memref<128x128xbf16, #tpu.memory_space<vmem>>, vector<128x128xbf16>
    %cst_9 = arith.constant dense<0.000000e+00> : vector<8x128xf32>
    %13 = tpu.matmul %11, %12, %cst_9 {dimension_numbers = #tpu.dot_dimension_numbers<[1], [0], [0], [1], [0, 0, 1, 1], [], []>} : vector<8x128xbf16>, vector<128x128xbf16>, vector<8x128xf32> -> vector<8x128xf32>
    %c0_10 = arith.constant 0 : index
    %c0_11 = arith.constant 0 : index
    %14 = vector.load %arg5[%c0_10, %c0_11] : memref<1x128xf32, #tpu.memory_space<vmem>>, vector<1x128xf32>
    %15 = vector.broadcast %14 : vector<1x128xf32> to vector<8x128xf32>
    %16 = arith.addf %13, %15 : vector<8x128xf32>
    %cst_12 = arith.constant 0.000000e+00 : f32
    %17 = vector.broadcast %cst_12 : f32 to vector<8x128xf32>
    %18 = arith.cmpf oge, %16, %17 : vector<8x128xf32>
    %cst_13 = arith.constant 0.00999999977 : f32
    %19 = vector.broadcast %cst_13 : f32 to vector<8x128xf32>
    %20 = arith.mulf %19, %16 : vector<8x128xf32>
    %21 = arith.select %18, %16, %20 : vector<8x128xi1>, vector<8x128xf32>
    %22 = arith.truncf %21 : vector<8x128xf32> to vector<8x128xbf16>
    %c0_14 = arith.constant 0 : index
    %c0_15 = arith.constant 0 : index
    %23 = vector.load %arg6[%c0_14, %c0_15] : memref<128x128xbf16, #tpu.memory_space<vmem>>, vector<128x128xbf16>
    %cst_16 = arith.constant dense<0.000000e+00> : vector<8x128xf32>
    %24 = tpu.matmul %22, %23, %cst_16 {dimension_numbers = #tpu.dot_dimension_numbers<[1], [0], [0], [1], [0, 0, 1, 1], [], []>} : vector<8x128xbf16>, vector<128x128xbf16>, vector<8x128xf32> -> vector<8x128xf32>
    %c0_17 = arith.constant 0 : index
    %c0_18 = arith.constant 0 : index
    %25 = vector.load %arg7[%c0_17, %c0_18] : memref<1x128xf32, #tpu.memory_space<vmem>>, vector<1x128xf32>
    %26 = vector.broadcast %25 : vector<1x128xf32> to vector<8x128xf32>
    %27 = arith.addf %24, %26 : vector<8x128xf32>
    %cst_19 = arith.constant 0.000000e+00 : f32
    %28 = vector.broadcast %cst_19 : f32 to vector<8x128xf32>
    %29 = arith.cmpf oge, %27, %28 : vector<8x128xf32>
    %cst_20 = arith.constant 0.00999999977 : f32
    %30 = vector.broadcast %cst_20 : f32 to vector<8x128xf32>
    %31 = arith.mulf %30, %27 : vector<8x128xf32>
    %32 = arith.select %29, %27, %31 : vector<8x128xi1>, vector<8x128xf32>
    %33 = arith.truncf %32 : vector<8x128xf32> to vector<8x128xbf16>
    %c0_21 = arith.constant 0 : index
    %c0_22 = arith.constant 0 : index
    %34 = vector.load %arg8[%c0_21, %c0_22] : memref<128x128xbf16, #tpu.memory_space<vmem>>, vector<128x128xbf16>
    %cst_23 = arith.constant dense<0.000000e+00> : vector<8x128xf32>
    %35 = tpu.matmul %33, %34, %cst_23 {dimension_numbers = #tpu.dot_dimension_numbers<[1], [0], [0], [1], [0, 0, 1, 1], [], []>} : vector<8x128xbf16>, vector<128x128xbf16>, vector<8x128xf32> -> vector<8x128xf32>
    %c0_24 = arith.constant 0 : index
    %c0_25 = arith.constant 0 : index
    %36 = vector.load %arg9[%c0_24, %c0_25] : memref<1x128xf32, #tpu.memory_space<vmem>>, vector<1x128xf32>
    %37 = vector.broadcast %36 : vector<1x128xf32> to vector<8x128xf32>
    %38 = arith.addf %35, %37 : vector<8x128xf32>
    %cst_26 = arith.constant 0.000000e+00 : f32
    %39 = vector.broadcast %cst_26 : f32 to vector<8x128xf32>
    %40 = arith.cmpf oge, %38, %39 : vector<8x128xf32>
    %cst_27 = arith.constant 0.00999999977 : f32
    %41 = vector.broadcast %cst_27 : f32 to vector<8x128xf32>
    %42 = arith.mulf %41, %38 : vector<8x128xf32>
    %43 = arith.select %40, %38, %42 : vector<8x128xi1>, vector<8x128xf32>
    %44 = arith.truncf %43 : vector<8x128xf32> to vector<8x128xbf16>
    %c0_28 = arith.constant 0 : index
    %c0_29 = arith.constant 0 : index
    %45 = vector.load %arg10[%c0_28, %c0_29] : memref<128x128xbf16, #tpu.memory_space<vmem>>, vector<128x128xbf16>
    %cst_30 = arith.constant dense<0.000000e+00> : vector<8x128xf32>
    %46 = tpu.matmul %44, %45, %cst_30 {dimension_numbers = #tpu.dot_dimension_numbers<[1], [0], [0], [1], [0, 0, 1, 1], [], []>} : vector<8x128xbf16>, vector<128x128xbf16>, vector<8x128xf32> -> vector<8x128xf32>
    %c0_31 = arith.constant 0 : index
    %c0_32 = arith.constant 0 : index
    %47 = vector.load %arg11[%c0_31, %c0_32] : memref<1x128xf32, #tpu.memory_space<vmem>>, vector<1x128xf32>
    %48 = vector.broadcast %47 : vector<1x128xf32> to vector<8x128xf32>
    %49 = arith.addf %46, %48 : vector<8x128xf32>
    %cst_33 = arith.constant 0.000000e+00 : f32
    %50 = vector.broadcast %cst_33 : f32 to vector<8x128xf32>
    %51 = arith.cmpf oge, %49, %50 : vector<8x128xf32>
    %cst_34 = arith.constant 0.00999999977 : f32
    %52 = vector.broadcast %cst_34 : f32 to vector<8x128xf32>
    %53 = arith.mulf %52, %49 : vector<8x128xf32>
    %54 = arith.select %51, %49, %53 : vector<8x128xi1>, vector<8x128xf32>
    %55 = arith.truncf %54 : vector<8x128xf32> to vector<8x128xbf16>
    %c0_35 = arith.constant 0 : index
    %c0_36 = arith.constant 0 : index
    %56 = vector.load %arg12[%c0_35, %c0_36] : memref<128x128xbf16, #tpu.memory_space<vmem>>, vector<128x128xbf16>
    %cst_37 = arith.constant dense<0.000000e+00> : vector<8x128xf32>
    %57 = tpu.matmul %55, %56, %cst_37 {dimension_numbers = #tpu.dot_dimension_numbers<[1], [0], [0], [1], [0, 0, 1, 1], [], []>} : vector<8x128xbf16>, vector<128x128xbf16>, vector<8x128xf32> -> vector<8x128xf32>
    %c0_38 = arith.constant 0 : index
    %c0_39 = arith.constant 0 : index
    %58 = vector.load %arg13[%c0_38, %c0_39] : memref<1x128xf32, #tpu.memory_space<vmem>>, vector<1x128xf32>
    %59 = vector.broadcast %58 : vector<1x128xf32> to vector<8x128xf32>
    %60 = arith.addf %57, %59 : vector<8x128xf32>
    %cst_40 = arith.constant 0.000000e+00 : f32
    %61 = vector.broadcast %cst_40 : f32 to vector<8x128xf32>
    %62 = arith.cmpf oge, %60, %61 : vector<8x128xf32>
    %cst_41 = arith.constant 0.00999999977 : f32
    %63 = vector.broadcast %cst_41 : f32 to vector<8x128xf32>
    %64 = arith.mulf %63, %60 : vector<8x128xf32>
    %65 = arith.select %62, %60, %64 : vector<8x128xi1>, vector<8x128xf32>
    %66 = arith.truncf %65 : vector<8x128xf32> to vector<8x128xbf16>
    %c0_42 = arith.constant 0 : index
    %c0_43 = arith.constant 0 : index
    %67 = vector.load %arg14[%c0_42, %c0_43] : memref<128x128xbf16, #tpu.memory_space<vmem>>, vector<128x128xbf16>
    %cst_44 = arith.constant dense<0.000000e+00> : vector<8x128xf32>
    %68 = tpu.matmul %66, %67, %cst_44 {dimension_numbers = #tpu.dot_dimension_numbers<[1], [0], [0], [1], [0, 0, 1, 1], [], []>} : vector<8x128xbf16>, vector<128x128xbf16>, vector<8x128xf32> -> vector<8x128xf32>
    %c0_45 = arith.constant 0 : index
    %c0_46 = arith.constant 0 : index
    %69 = vector.load %arg15[%c0_45, %c0_46] : memref<1x128xf32, #tpu.memory_space<vmem>>, vector<1x128xf32>
    %70 = vector.broadcast %69 : vector<1x128xf32> to vector<8x128xf32>
    %71 = arith.addf %68, %70 : vector<8x128xf32>
    %72 = vector.extract_strided_slice %71 {offsets = [0, 0], sizes = [8, 1], strides = [1, 1]} : vector<8x128xf32> to vector<8x1xf32>
    %cst_47 = arith.constant 0.000000e+00 : f32
    %73 = vector.broadcast %cst_47 : f32 to vector<8x1xf32>
    %74 = arith.subf %73, %72 : vector<8x1xf32>
    %75 = math.exp %74 : vector<8x1xf32>
    %cst_48 = arith.constant 1.000000e+00 : f32
    %76 = vector.broadcast %cst_48 : f32 to vector<8x1xf32>
    %77 = arith.addf %76, %75 : vector<8x1xf32>
    %cst_49 = arith.constant 1.000000e+00 : f32
    %78 = vector.broadcast %cst_49 : f32 to vector<8x1xf32>
    %79 = arith.divf %78, %77 : vector<8x1xf32>
    %c0_50 = arith.constant 0 : index
    %c0_51 = arith.constant 0 : index
    %80 = vector.load %arg16[%c0_50, %c0_51] : memref<8x1xf32, #tpu.memory_space<vmem>>, vector<8x1xf32>
    tpu.vector_store %arg16[%c0_50, %c0_51], %79 {strides = array<i32>} : memref<8x1xf32, #tpu.memory_space<vmem>>, vector<8x1xf32>,
    return
  }
  func.func @transform_0(%arg0: i32) -> (i32, i32) {
    %c0_i32 = arith.constant 0 : i32
    %c0_i32_0 = arith.constant 0 : i32
    return %arg0, %c0_i32 : i32, i32
  }
  func.func @transform_1(%arg0: i32) -> (i32, i32) {
    %c0_i32 = arith.constant 0 : i32
    %c0_i32_0 = arith.constant 0 : i32
    %c0_i32_1 = arith.constant 0 : i32
    return %c0_i32, %c0_i32_0 : i32, i32
  }
  func.func @transform_2(%arg0: i32) -> (i32, i32) {
    %c0_i32 = arith.constant 0 : i32
    %c0_i32_0 = arith.constant 0 : i32
    %c0_i32_1 = arith.constant 0 : i32
    return %c0_i32, %c0_i32_0 : i32, i32
  }
  func.func @transform_3(%arg0: i32) -> (i32, i32) {
    %c0_i32 = arith.constant 0 : i32
    %c0_i32_0 = arith.constant 0 : i32
    %c0_i32_1 = arith.constant 0 : i32
    return %c0_i32, %c0_i32_0 : i32, i32
  }
  func.func @transform_4(%arg0: i32) -> (i32, i32) {
    %c0_i32 = arith.constant 0 : i32
    %c0_i32_0 = arith.constant 0 : i32
    %c0_i32_1 = arith.constant 0 : i32
    return %c0_i32, %c0_i32_0 : i32, i32
  }
  func.func @transform_5(%arg0: i32) -> (i32, i32) {
    %c0_i32 = arith.constant 0 : i32
    %c0_i32_0 = arith.constant 0 : i32
    %c0_i32_1 = arith.constant 0 : i32
    return %c0_i32, %c0_i32_0 : i32, i32
  }
  func.func @transform_6(%arg0: i32) -> (i32, i32) {
    %c0_i32 = arith.constant 0 : i32
    %c0_i32_0 = arith.constant 0 : i32
    %c0_i32_1 = arith.constant 0 : i32
    return %c0_i32, %c0_i32_0 : i32, i32
  }
  func.func @transform_7(%arg0: i32) -> (i32, i32) {
    %c0_i32 = arith.constant 0 : i32
    %c0_i32_0 = arith.constant 0 : i32
    %c0_i32_1 = arith.constant 0 : i32
    return %c0_i32, %c0_i32_0 : i32, i32
  }
  func.func @transform_8(%arg0: i32) -> (i32, i32) {
    %c0_i32 = arith.constant 0 : i32
    %c0_i32_0 = arith.constant 0 : i32
    %c0_i32_1 = arith.constant 0 : i32
    return %c0_i32, %c0_i32_0 : i32, i32
  }
  func.func @transform_9(%arg0: i32) -> (i32, i32) {
    %c0_i32 = arith.constant 0 : i32
    %c0_i32_0 = arith.constant 0 : i32
    %c0_i32_1 = arith.constant 0 : i32
    return %c0_i32, %c0_i32_0 : i32, i32
  }
  func.func @transform_10(%arg0: i32) -> (i32, i32) {
    %c0_i32 = arith.constant 0 : i32
    %c0_i32_0 = arith.constant 0 : i32
    %c0_i32_1 = arith.constant 0 : i32
    return %c0_i32, %c0_i32_0 : i32, i32
  }
  func.func @transform_11(%arg0: i32) -> (i32, i32) {
    %c0_i32 = arith.constant 0 : i32
    %c0_i32_0 = arith.constant 0 : i32
    %c0_i32_1 = arith.constant 0 : i32
    return %c0_i32, %c0_i32_0 : i32, i32
  }
  func.func @transform_12(%arg0: i32) -> (i32, i32) {
    %c0_i32 = arith.constant 0 : i32
    %c0_i32_0 = arith.constant 0 : i32
    %c0_i32_1 = arith.constant 0 : i32
    return %c0_i32, %c0_i32_0 : i32, i32
  }
  func.func @transform_13(%arg0: i32) -> (i32, i32) {
    %c0_i32 = arith.constant 0 : i32
    %c0_i32_0 = arith.constant 0 : i32
    %c0_i32_1 = arith.constant 0 : i32
    return %c0_i32, %c0_i32_0 : i32, i32
  }
  func.func @transform_14(%arg0: i32) -> (i32, i32) {
    %c0_i32 = arith.constant 0 : i32
    %c0_i32_0 = arith.constant 0 : i32
    %c0_i32_1 = arith.constant 0 : i32
    return %c0_i32, %c0_i32_0 : i32, i32
  }
  func.func @transform_15(%arg0: i32) -> (i32, i32) {
    %c0_i32 = arith.constant 0 : i32
    %c0_i32_0 = arith.constant 0 : i32
    return %arg0, %c0_i32 : i32, i32
  }
}

</mosaic_0001>

<llo_original>
// kernel: _bitpred_forward.1
$region0: #{_bitpred_forward.1}
  #allocation0 [shape = 'u32[]', space=smem, size = 0x4, offset = 0x4, fixed_abs, tag = 'smem constant byte address 0x4 - core index']
  #allocation1 [shape = 'u32[144,128]{1,0:T(1,128)}', space=vmem, size = 0x12000, scoped, tag = 'internal scratch']
  %s0 = inlined_call_operand.hbm [shape: f32[8,42], index: 0, kind: input, shape index: {}]
  %s1 = inlined_call_operand.hbm [shape: f32[42,128], index: 1, kind: input, shape index: {}]
  %s2 = inlined_call_operand.vmem [shape: f32[1,128], index: 2, kind: input, shape index: {}]
  %s3 = inlined_call_operand.hbm [shape: bf16[128,128], index: 3, kind: input, shape index: {}]
  %s4 = inlined_call_operand.vmem [shape: f32[1,128], index: 4, kind: input, shape index: {}]
  %s5 = inlined_call_operand.hbm [shape: bf16[128,128], index: 5, kind: input, shape index: {}]
  %s6 = inlined_call_operand.vmem [shape: f32[1,128], index: 6, kind: input, shape index: {}]
  %s7 = inlined_call_operand.hbm [shape: bf16[128,128], index: 7, kind: input, shape index: {}]
  %s8 = inlined_call_operand.vmem [shape: f32[1,128], index: 8, kind: input, shape index: {}]
  %s9 = inlined_call_operand.hbm [shape: bf16[128,128], index: 9, kind: input, shape index: {}]
  %s10 = inlined_call_operand.vmem [shape: f32[1,128], index: 10, kind: input, shape index: {}]
  %s11 = inlined_call_operand.hbm [shape: bf16[128,128], index: 11, kind: input, shape index: {}]
  %s12 = inlined_call_operand.vmem [shape: f32[1,128], index: 12, kind: input, shape index: {}]
  %s13 = inlined_call_operand.hbm [shape: bf16[128,128], index: 13, kind: input, shape index: {}]
  %s14 = inlined_call_operand.vmem [shape: f32[1,128], index: 14, kind: input, shape index: {}]
  %s15 = inlined_call_operand.vmem [shape: f32[8,1], index: 15, kind: output, shape index: {}]
  %s16 = sld [smem:[#allocation0]]
  $region102: #{_bitpred_forward.1} parent=0
    _
  %s18 = ssub.s32 1, %s16
  %s19 = scalar_select 0, %s18, %s16
  $region1: #{_bitpred_forward.1} parent=0
    #allocation2 [shape = 'u8[4096]{0}', space=vmem, size = 0x1000, scoped, tag = 'input window, operand 0, single buffered']
    #allocation3 [shape = 's32[1]{0}', space=sflag, size = 0x4, scoped, tag = 'scoped memory for _bitpred_forward.1']
    #allocation4 [shape = 'u8[24576]{0}', space=vmem, size = 0x6000, scoped, tag = 'input window, operand 1, single buffered']
    #allocation5 [shape = 's32[1]{0}', space=sflag, size = 0x4, scoped, tag = 'scoped memory for _bitpred_forward.1']
    #allocation6 [shape = 'u8[32768]{0}', space=vmem, size = 0x8000, scoped, tag = 'input window, operand 3, single buffered']
    #allocation7 [shape = 'u8[32768]{0}', space=vmem, size = 0x8000, scoped, tag = 'input window, operand 5, single buffered']
    #allocation8 [shape = 's32[1]{0}', space=sflag, size = 0x4, scoped, tag = 'scoped memory for _bitpred_forward.1']
    #allocation9 [shape = 'u8[32768]{0}', space=vmem, size = 0x8000, scoped, tag = 'input window, operand 7, single buffered']
    #allocation10 [shape = 'u8[32768]{0}', space=vmem, size = 0x8000, scoped, tag = 'input window, operand 9, single buffered']
    #allocation11 [shape = 's32[1]{0}', space=sflag, size = 0x4, scoped, tag = 'scoped memory for _bitpred_forward.1']
    #allocation12 [shape = 'u8[32768]{0}', space=vmem, size = 0x8000, scoped, tag = 'input window, operand 11, single buffered']
    #allocation13 [shape = 'u8[32768]{0}', space=vmem, size = 0x8000, scoped, tag = 'input window, operand 13, single buffered']
    #allocation14 [shape = 's32[1]{0}', space=sflag, size = 0x4, scoped, tag = 'scoped memory for _bitpred_forward.1']
    %20 = vsyncpa [#allocation3], 0
    %21 = vsyncpa [#allocation5], 0
    %22 = vsyncpa [#allocation8], 0
    %23 = vsyncpa [#allocation11], 0
    %24 = vsyncpa [#allocation14], 0
    // Predicated region
    $region2: #{_bitpred_forward.1} parent=1 // pred_check
      _
    $region3: #{_bitpred_forward.1} parent=1 // pred_check_branch
      %26 = sbr.rel (0) target = $region5
    $region4: #{_bitpred_forward.1} parent=1 // pred_region
      %s28 = ssub.s32 128, 128
      %29 = vsyncadd [#allocation3], %s28
      %s31 = sshll.u32 [#allocation2], 4
      %s32 = int_to_ptr.vmem [resolvable:$true] %s31
      %34 = dma.hbm_to_vmem [thread:$0]  %s0, 128, %s32, [#allocation3]
    $region5: #{_bitpred_forward.1} parent=1 // pred_fallthru
      _
    // Predicated region
    $region6: #{_bitpred_forward.1} parent=1 // pred_check
      _
    $region7: #{_bitpred_forward.1} parent=1 // pred_check_branch
      %36 = sbr.rel (0) target = $region9
    $region8: #{_bitpred_forward.1} parent=1 // pred_region
      %s38 = ssub.s32 768, 768
      %39 = vsyncadd [#allocation5], %s38
      %s40 = sshll.u32 [#allocation4], 4
      %s41 = int_to_ptr.vmem [resolvable:$true] %s40
      %46 = dma.hbm_to_vmem [thread:$0]  %s1, 768, %s41, [#allocation5], 128, 128, 8
    $region9: #{_bitpred_forward.1} parent=1 // pred_fallthru
      _
    // Predicated region
    $region10: #{_bitpred_forward.1} parent=1 // pred_check
      _
    $region11: #{_bitpred_forward.1} parent=1 // pred_check_branch
      %48 = sbr.rel (0) target = $region13
    $region12: #{_bitpred_forward.1} parent=1 // pred_region
      _
    $region13: #{_bitpred_forward.1} parent=1 // pred_fallthru
      _
    // Predicated region
    $region14: #{_bitpred_forward.1} parent=1 // pred_check
      _
    $region15: #{_bitpred_forward.1} parent=1 // pred_check_branch
      %50 = sbr.rel (0) target = $region17
    $region16: #{_bitpred_forward.1} parent=1 // pred_region
      %s52 = ssub.s32 1024, 1024
      %53 = vsyncadd [#allocation5], %s52
      %s54 = sshll.u32 [#allocation6], 4
      %s55 = int_to_ptr.vmem [resolvable:$true] %s54
      %60 = dma.hbm_to_vmem [thread:$0]  %s3, 1024, %s55, [#allocation5], 64, 64, 4
    $region17: #{_bitpred_forward.1} parent=1 // pred_fallthru
      _
    // Predicated region
    $region18: #{_bitpred_forward.1} parent=1 // pred_check
      _
    $region19: #{_bitpred_forward.1} parent=1 // pred_check_branch
      %62 = sbr.rel (0) target = $region21
    $region20: #{_bitpred_forward.1} parent=1 // pred_region
      _
    $region21: #{_bitpred_forward.1} parent=1 // pred_fallthru
      _
    // Predicated region
    $region22: #{_bitpred_forward.1} parent=1 // pred_check
      _
    $region23: #{_bitpred_forward.1} parent=1 // pred_check_branch
      %64 = sbr.rel (0) target = $region25
    $region24: #{_bitpred_forward.1} parent=1 // pred_region
      %s66 = ssub.s32 1024, 1024
      %67 = vsyncadd [#allocation8], %s66
      %s68 = sshll.u32 [#allocation7], 4
      %s69 = int_to_ptr.vmem [resolvable:$true] %s68
      %74 = dma.hbm_to_vmem [thread:$0]  %s5, 1024, %s69, [#allocation8], 64, 64, 4
    $region25: #{_bitpred_forward.1} parent=1 // pred_fallthru
      _
    // Predicated region
    $region26: #{_bitpred_forward.1} parent=1 // pred_check
      _
    $region27: #{_bitpred_forward.1} parent=1 // pred_check_branch
      %76 = sbr.rel (0) target = $region29
    $region28: #{_bitpred_forward.1} parent=1 // pred_region
      _
    $region29: #{_bitpred_forward.1} parent=1 // pred_fallthru
      _
    // Predicated region
    $region30: #{_bitpred_forward.1} parent=1 // pred_check
      _
    $region31: #{_bitpred_forward.1} parent=1 // pred_check_branch
      %78 = sbr.rel (0) target = $region33
    $region32: #{_bitpred_forward.1} parent=1 // pred_region
      %s80 = ssub.s32 1024, 1024
      %81 = vsyncadd [#allocation8], %s80
      %s82 = sshll.u32 [#allocation9], 4
      %s83 = int_to_ptr.vmem [resolvable:$true] %s82
      %88 = dma.hbm_to_vmem [thread:$0]  %s7, 1024, %s83, [#allocation8], 64, 64, 4
    $region33: #{_bitpred_forward.1} parent=1 // pred_fallthru
      _
    // Predicated region
    $region34: #{_bitpred_forward.1} parent=1 // pred_check
      _
    $region35: #{_bitpred_forward.1} parent=1 // pred_check_branch
      %90 = sbr.rel (0) target = $region37
    $region36: #{_bitpred_forward.1} parent=1 // pred_region
      _
    $region37: #{_bitpred_forward.1} parent=1 // pred_fallthru
      _
    // Predicated region
    $region38: #{_bitpred_forward.1} parent=1 // pred_check
      _
    $region39: #{_bitpred_forward.1} parent=1 // pred_check_branch
      %92 = sbr.rel (0) target = $region41
    $region40: #{_bitpred_forward.1} parent=1 // pred_region
      %s94 = ssub.s32 1024, 1024
      %95 = vsyncadd [#allocation11], %s94
      %s96 = sshll.u32 [#allocation10], 4
      %s97 = int_to_ptr.vmem [resolvable:$true] %s96
      %102 = dma.hbm_to_vmem [thread:$0]  %s9, 1024, %s97, [#allocation11], 64, 64, 4
    $region41: #{_bitpred_forward.1} parent=1 // pred_fallthru
      _
    // Predicated region
    $region42: #{_bitpred_forward.1} parent=1 // pred_check
      _
    $region43: #{_bitpred_forward.1} parent=1 // pred_check_branch
      %104 = sbr.rel (0) target = $region45
    $region44: #{_bitpred_forward.1} parent=1 // pred_region
      _
    $region45: #{_bitpred_forward.1} parent=1 // pred_fallthru
      _
    // Predicated region
    $region46: #{_bitpred_forward.1} parent=1 // pred_check
      _
    $region47: #{_bitpred_forward.1} parent=1 // pred_check_branch
      %106 = sbr.rel (0) target = $region49
    $region48: #{_bitpred_forward.1} parent=1 // pred_region
      %s108 = ssub.s32 1024, 1024
      %109 = vsyncadd [#allocation11], %s108
      %s110 = sshll.u32 [#allocation12], 4
      %s111 = int_to_ptr.vmem [resolvable:$true] %s110
      %116 = dma.hbm_to_vmem [thread:$0]  %s11, 1024, %s111, [#allocation11], 64, 64, 4
    $region49: #{_bitpred_forward.1} parent=1 // pred_fallthru
      _
    // Predicated region
    $region50: #{_bitpred_forward.1} parent=1 // pred_check
      _
    $region51: #{_bitpred_forward.1} parent=1 // pred_check_branch
      %118 = sbr.rel (0) target = $region53
    $region52: #{_bitpred_forward.1} parent=1 // pred_region
      _
    $region53: #{_bitpred_forward.1} parent=1 // pred_fallthru
      _
    // Predicated region
    $region54: #{_bitpred_forward.1} parent=1 // pred_check
      _
    $region55: #{_bitpred_forward.1} parent=1 // pred_check_branch
      %120 = sbr.rel (0) target = $region57
    $region56: #{_bitpred_forward.1} parent=1 // pred_region
      %s122 = ssub.s32 1024, 1024
      %123 = vsyncadd [#allocation14], %s122
      %s124 = sshll.u32 [#allocation13], 4
      %s125 = int_to_ptr.vmem [resolvable:$true] %s124
      %130 = dma.hbm_to_vmem [thread:$0]  %s13, 1024, %s125, [#allocation14], 64, 64, 4
    $region57: #{_bitpred_forward.1} parent=1 // pred_fallthru
      _
    // Predicated region
    $region58: #{_bitpred_forward.1} parent=1 // pred_check
      _
    $region59: #{_bitpred_forward.1} parent=1 // pred_check_branch
      %132 = sbr.rel (0) target = $region61
    $region60: #{_bitpred_forward.1} parent=1 // pred_region
      _
    $region61: #{_bitpred_forward.1} parent=1 // pred_fallthru
      _
    // Predicated region
    $region62: #{_bitpred_forward.1} parent=1 // pred_check
      _
    $region63: #{_bitpred_forward.1} parent=1 // pred_check_branch
      %134 = sbr.rel (0) target = $region65
    $region64: #{_bitpred_forward.1} parent=1 // pred_region
      %135 = dma.done [#allocation3], 128
    $region65: #{_bitpred_forward.1} parent=1 // pred_fallthru
      _
    // Predicated region
    $region66: #{_bitpred_forward.1} parent=1 // pred_check
      _
    $region67: #{_bitpred_forward.1} parent=1 // pred_check_branch
      %137 = sbr.rel (0) target = $region69
    $region68: #{_bitpred_forward.1} parent=1 // pred_region
      %138 = dma.done [#allocation5], 768
    $region69: #{_bitpred_forward.1} parent=1 // pred_fallthru
      _
    // Predicated region
    $region70: #{_bitpred_forward.1} parent=1 // pred_check
      _
    $region71: #{_bitpred_forward.1} parent=1 // pred_check_branch
      %140 = sbr.rel (0) target = $region73
    $region72: #{_bitpred_forward.1} parent=1 // pred_region
      %141 = dma.done [#allocation5], 1024
    $region73: #{_bitpred_forward.1} parent=1 // pred_fallthru
      _
    // Predicated region
    $region74: #{_bitpred_forward.1} parent=1 // pred_check
      _
    $region75: #{_bitpred_forward.1} parent=1 // pred_check_branch
      %143 = sbr.rel (0) target = $region77
    $region76: #{_bitpred_forward.1} parent=1 // pred_region
      %144 = dma.done [#allocation8], 1024
    $region77: #{_bitpred_forward.1} parent=1 // pred_fallthru
      _
    // Predicated region
    $region78: #{_bitpred_forward.1} parent=1 // pred_check
      _
    $region79: #{_bitpred_forward.1} parent=1 // pred_check_branch
      %146 = sbr.rel (0) target = $region81
    $region80: #{_bitpred_forward.1} parent=1 // pred_region
      %147 = dma.done [#allocation8], 1024
    $region81: #{_bitpred_forward.1} parent=1 // pred_fallthru
      _
    // Predicated region
    $region82: #{_bitpred_forward.1} parent=1 // pred_check
      _
    $region83: #{_bitpred_forward.1} parent=1 // pred_check_branch
      %149 = sbr.rel (0) target = $region85
    $region84: #{_bitpred_forward.1} parent=1 // pred_region
      %150 = dma.done [#allocation11], 1024
    $region85: #{_bitpred_forward.1} parent=1 // pred_fallthru
      _
    // Predicated region
    $region86: #{_bitpred_forward.1} parent=1 // pred_check
      _
    $region87: #{_bitpred_forward.1} parent=1 // pred_check_branch
      %152 = sbr.rel (0) target = $region89
    $region88: #{_bitpred_forward.1} parent=1 // pred_region
      %153 = dma.done [#allocation11], 1024
    $region89: #{_bitpred_forward.1} parent=1 // pred_fallthru
      _
    // Predicated region
    $region90: #{_bitpred_forward.1} parent=1 // pred_check
      _
    $region91: #{_bitpred_forward.1} parent=1 // pred_check_branch
      %155 = sbr.rel (0) target = $region93
    $region92: #{_bitpred_forward.1} parent=1 // pred_region
      %156 = dma.done [#allocation14], 1024
    $region93: #{_bitpred_forward.1} parent=1 // pred_fallthru
      _
    %v158 = vld [vmem:[#allocation2] sm:$0xff]
    %v159 = vld [vmem:[#allocation4] sm:$0xff]
    %v160 = vld [vmem:[#allocation4 + $0x8] sm:$0xff]
    %v161 = vld [vmem:[#allocation4 + $0x10] sm:$0xff]
    %v162 = vld [vmem:[#allocation4 + $0x18] sm:$0xff]
    %v163 = vld [vmem:[#allocation4 + $0x20] sm:$0xff]
    %v164 = vld [vmem:[#allocation4 + $0x28] sm:$0x3]
    %v165 = vld [vmem:[%s2] sm:$0x1]
    %v167 = vlaneseq
    %v168 = vshrl.u32 %v167, 7
    %v169 = vsub.s32 0, %v168
    %v170 = vrot.slane %v165, %v169
    %vm172 = vcmask 343040
    %v174 = vsel %vm172, %v158, 0
    %vm176 = vcmask 1041408
    %v178 = vsel %vm176, %v164, 0
    %180 = vmatprep.subr.mxu0 0.0
    %181 = vmatpush1.msra.mxu0 %v159
    %182 = vmatprep.subr.mxu0 0.0
    %183 = vmatpush1.msra.mxu0 %v160
    %184 = vmatprep.subr.mxu0 0.0
    %185 = vmatpush1.msra.mxu0 %v161
    %186 = vmatprep.subr.mxu0 0.0
    %187 = vmatpush1.msra.mxu0 %v162
    %188 = vmatprep.subr.mxu0 0.0
    %189 = vmatpush1.msra.mxu0 %v163
    %190 = vmatprep.subr.mxu0 0.0
    %191 = vmatpush1.msra.mxu0 %v178
    %192 = vmatprep.subr.mxu0 0.0
    %193 = vmatpush1.msra.mxu0 0.0
    %194 = vmatprep.subr.mxu0 0.0
    %195 = vmatpush1.msra.mxu0 0.0
    %196 = vmatprep.subr.mxu0 0.0
    %197 = vmatpush1.msra.mxu0 0.0
    %198 = vmatprep.subr.mxu0 0.0
    %199 = vmatpush1.msra.mxu0 0.0
    %200 = vmatprep.subr.mxu0 0.0
    %201 = vmatpush1.msra.mxu0 0.0
    %202 = vmatprep.subr.mxu0 0.0
    %203 = vmatpush1.msra.mxu0 0.0
    %204 = vmatprep.subr.mxu0 0.0
    %205 = vmatpush1.msra.mxu0 0.0
    %206 = vmatprep.subr.mxu0 0.0
    %207 = vmatpush1.msra.mxu0 0.0
    %208 = vmatprep.subr.mxu0 0.0
    %209 = vmatpush1.msra.mxu0 0.0
    %210 = vmatprep.subr.mxu0 0.0
    %211 = vmatpush1.msra.mxu0 0.0
    %212 = vmatprep.subr.mxu0 0.0
    %213 = vmatpush1.msra.mxu0 0.0
    %214 = vmatprep.subr.mxu0 0.0
    %215 = vmatpush1.msra.mxu0 0.0
    %216 = vmatprep.subr.mxu0 0.0
    %217 = vmatpush1.msra.mxu0 0.0
    %218 = vmatprep.subr.mxu0 0.0
    %219 = vmatpush1.msra.mxu0 0.0
    %220 = vmatprep.subr.mxu0 0.0
    %221 = vmatpush1.msra.mxu0 0.0
    %222 = vmatprep.subr.mxu0 0.0
    %223 = vmatpush1.msra.mxu0 0.0
    %224 = vmatprep.subr.mxu0 0.0
    %225 = vmatpush1.msra.mxu0 0.0
    %226 = vmatprep.subr.mxu0 0.0
    %227 = vmatpush1.msra.mxu0 0.0
    %228 = vmatprep.subr.mxu0 0.0
    %229 = vmatpush1.msra.mxu0 0.0
    %230 = vmatprep.subr.mxu0 0.0
    %231 = vmatpush1.msra.mxu0 0.0
    %232 = vmatprep.subr.mxu0 0.0
    %233 = vmatpush1.msra.mxu0 0.0
    %234 = vmatprep.subr.mxu0 0.0
    %235 = vmatpush1.msra.mxu0 0.0
    %236 = vmatprep.subr.mxu0 0.0
    %237 = vmatpush1.msra.mxu0 0.0
    %238 = vmatprep.subr.mxu0 0.0
    %239 = vmatpush1.msra.mxu0 0.0
    %240 = vmatprep.subr.mxu0 0.0
    %241 = vmatpush1.msra.mxu0 0.0
    %242 = vmatprep.subr.mxu0 0.0
    %243 = vmatpush1.msra.mxu0 0.0
    %244 = vmatprep.mubr.f32.mxu0 0.0
    %245 = vmatmul.mubr.f32.gmra.mrb[0].mxu0 %v174
    %v246 = vpop.f32.mrb[0].mxu0
    %v247 = vadd.f32 %v170, %v246
    %v248 = vpop.f32.mrb[0].mxu0
    %249 = vdwg.mxu0
    %vm250 = vcmp.ge.f32.partialorder %v247, 0.0
    %v251 = vmul.f32 %v247, 0.01
    %v252 = vsel %vm250, %v247, %v251
    %v253 = vpack.c.bf16 %v252, %v252
    %v254 = vld [vmem:[#allocation6] sm:$0xf]
    %v255 = vld [vmem:[#allocation6 + $0x4] sm:$0xf]
    %v256 = vld [vmem:[#allocation6 + $0x8] sm:$0xf]
    %v257 = vld [vmem:[#allocation6 + $0xc] sm:$0xf]
    %v258 = vld [vmem:[#allocation6 + $0x10] sm:$0xf]
    %v259 = vld [vmem:[#allocation6 + $0x14] sm:$0xf]
    %v260 = vld [vmem:[#allocation6 + $0x18] sm:$0xf]
    %v261 = vld [vmem:[#allocation6 + $0x1c] sm:$0xf]
    %v262 = vld [vmem:[#allocation6 + $0x20] sm:$0xf]
    %v263 = vld [vmem:[#allocation6 + $0x24] sm:$0xf]
    %v264 = vld [vmem:[#allocation6 + $0x28] sm:$0xf]
    %v265 = vld [vmem:[#allocation6 + $0x2c] sm:$0xf]
    %v266 = vld [vmem:[#allocation6 + $0x30] sm:$0xf]
    %v267 = vld [vmem:[#allocation6 + $0x34] sm:$0xf]
    %v268 = vld [vmem:[#allocation6 + $0x38] sm:$0xf]
    %v269 = vld [vmem:[#allocation6 + $0x3c] sm:$0xf]
    %v270 = vld [vmem:[%s4] sm:$0x1]
    %v272 = vlaneseq
    %v273 = vshrl.u32 %v272, 7
    %v274 = vsub.s32 0, %v273
    %v275 = vrot.slane %v270, %v274
    %v293 = vunpack.c.l.b16 %v254
    %v294 = vunpack.c.l.b16 %v255
    %v295 = vunpack.c.l.b16 %v256
    %v296 = vunpack.c.l.b16 %v257
    %v297 = vunpack.c.l.b16 %v258
    %v298 = vunpack.c.l.b16 %v259
    %v299 = vunpack.c.l.b16 %v260
    %v300 = vunpack.c.l.b16 %v261
    %v301 = vunpack.c.l.b16 %v262
    %v302 = vunpack.c.l.b16 %v263
    %v303 = vunpack.c.l.b16 %v264
    %v304 = vunpack.c.l.b16 %v265
    %v305 = vunpack.c.l.b16 %v266
    %v306 = vunpack.c.l.b16 %v267
    %v307 = vunpack.c.l.b16 %v268
    %v308 = vunpack.c.l.b16 %v269
    %v309 = vpack.c.b16 %v294, %v293
    %v310 = vpack.c.b16 %v296, %v295
    %v311 = vpack.c.b16 %v298, %v297
    %v312 = vpack.c.b16 %v300, %v299
    %v313 = vpack.c.b16 %v302, %v301
    %v314 = vpack.c.b16 %v304, %v303
    %v315 = vpack.c.b16 %v306, %v305
    %v316 = vpack.c.b16 %v308, %v307
    %325 = vmatprep.subr.bf16.mxu0 0
    %326 = vmatpush1.bf16.msra.mxu0 %v309
    %327 = vmatprep.subr.bf16.mxu0 0
    %328 = vmatpush1.bf16.msra.mxu0 %v310
    %329 = vmatprep.subr.bf16.mxu0 0
    %330 = vmatpush1.bf16.msra.mxu0 %v311
    %331 = vmatprep.subr.bf16.mxu0 0
    %332 = vmatpush1.bf16.msra.mxu0 %v312
    %333 = vmatprep.subr.bf16.mxu0 0
    %334 = vmatpush1.bf16.msra.mxu0 %v313
    %335 = vmatprep.subr.bf16.mxu0 0
    %336 = vmatpush1.bf16.msra.mxu0 %v314
    %337 = vmatprep.subr.bf16.mxu0 0
    %338 = vmatpush1.bf16.msra.mxu0 %v315
    %339 = vmatprep.subr.bf16.mxu0 0
    %340 = vmatpush1.bf16.msra.mxu0 %v316
    %341 = vmatprep.subr.bf16.mxu0 0
    %342 = vmatpush1.bf16.msra.mxu0 0
    %343 = vmatprep.subr.bf16.mxu0 0
    %344 = vmatpush1.bf16.msra.mxu0 0
    %345 = vmatprep.subr.bf16.mxu0 0
    %346 = vmatpush1.bf16.msra.mxu0 0
    %347 = vmatprep.subr.bf16.mxu0 0
    %348 = vmatpush1.bf16.msra.mxu0 0
    %349 = vmatprep.subr.bf16.mxu0 0
    %350 = vmatpush1.bf16.msra.mxu0 0
    %351 = vmatprep.subr.bf16.mxu0 0
    %352 = vmatpush1.bf16.msra.mxu0 0
    %353 = vmatprep.subr.bf16.mxu0 0
    %354 = vmatpush1.bf16.msra.mxu0 0
    %355 = vmatprep.subr.bf16.mxu0 0
    %356 = vmatpush1.bf16.msra.mxu0 0
    %357 = vmatprep.mubr.bf16.mxu0 0
    %358 = vmatmul.mubr.bf16.gmra.mrb[0].mxu0 %v253
    %v359 = vpop.f32.mrb[0].mxu0
    %v360 = vadd.f32 %v275, %v359
    %v361 = vpop.f32.mrb[0].mxu0
    %v362 = vpop.f32.mrb[0].mxu0
    %v363 = vpop.f32.mrb[0].mxu0
    %364 = vdwg.mxu0
    %vm365 = vcmp.ge.f32.partialorder %v360, 0.0
    %v366 = vmul.f32 %v360, 0.01
    %v367 = vsel %vm365, %v360, %v366
    %v368 = vpack.c.bf16 %v367, %v367
    %v369 = vld [vmem:[#allocation7] sm:$0xf]
    %v370 = vld [vmem:[#allocation7 + $0x4] sm:$0xf]
    %v371 = vld [vmem:[#allocation7 + $0x8] sm:$0xf]
    %v372 = vld [vmem:[#allocation7 + $0xc] sm:$0xf]
    %v373 = vld [vmem:[#allocation7 + $0x10] sm:$0xf]
    %v374 = vld [vmem:[#allocation7 + $0x14] sm:$0xf]
    %v375 = vld [vmem:[#allocation7 + $0x18] sm:$0xf]
    %v376 = vld [vmem:[#allocation7 + $0x1c] sm:$0xf]
    %v377 = vld [vmem:[#allocation7 + $0x20] sm:$0xf]
    %v378 = vld [vmem:[#allocation7 + $0x24] sm:$0xf]
    %v379 = vld [vmem:[#allocation7 + $0x28] sm:$0xf]
    %v380 = vld [vmem:[#allocation7 + $0x2c] sm:$0xf]
    %v381 = vld [vmem:[#allocation7 + $0x30] sm:$0xf]
    %v382 = vld [vmem:[#allocation7 + $0x34] sm:$0xf]
    %v383 = vld [vmem:[#allocation7 + $0x38] sm:$0xf]
    %v384 = vld [vmem:[#allocation7 + $0x3c] sm:$0xf]
    %v385 = vld [vmem:[%s6] sm:$0x1]
    %v387 = vlaneseq
    %v388 = vshrl.u32 %v387, 7
    %v389 = vsub.s32 0, %v388
    %v390 = vrot.slane %v385, %v389
    %v408 = vunpack.c.l.b16 %v369
    %v409 = vunpack.c.l.b16 %v370
    %v410 = vunpack.c.l.b16 %v371
    %v411 = vunpack.c.l.b16 %v372
    %v412 = vunpack.c.l.b16 %v373
    %v413 = vunpack.c.l.b16 %v374
    %v414 = vunpack.c.l.b16 %v375
    %v415 = vunpack.c.l.b16 %v376
    %v416 = vunpack.c.l.b16 %v377
    %v417 = vunpack.c.l.b16 %v378
    %v418 = vunpack.c.l.b16 %v379
    %v419 = vunpack.c.l.b16 %v380
    %v420 = vunpack.c.l.b16 %v381
    %v421 = vunpack.c.l.b16 %v382
    %v422 = vunpack.c.l.b16 %v383
    %v423 = vunpack.c.l.b16 %v384
    %v424 = vpack.c.b16 %v409, %v408
    %v425 = vpack.c.b16 %v411, %v410
    %v426 = vpack.c.b16 %v413, %v412
    %v427 = vpack.c.b16 %v415, %v414
    %v428 = vpack.c.b16 %v417, %v416
    %v429 = vpack.c.b16 %v419, %v418
    %v430 = vpack.c.b16 %v421, %v420
    %v431 = vpack.c.b16 %v423, %v422
    %440 = vmatprep.subr.bf16.mxu0 0
    %441 = vmatpush1.bf16.msra.mxu0 %v424
    %442 = vmatprep.subr.bf16.mxu0 0
    %443 = vmatpush1.bf16.msra.mxu0 %v425
    %444 = vmatprep.subr.bf16.mxu0 0
    %445 = vmatpush1.bf16.msra.mxu0 %v426
    %446 = vmatprep.subr.bf16.mxu0 0
    %447 = vmatpush1.bf16.msra.mxu0 %v427
    %448 = vmatprep.subr.bf16.mxu0 0
    %449 = vmatpush1.bf16.msra.mxu0 %v428
    %450 = vmatprep.subr.bf16.mxu0 0
    %451 = vmatpush1.bf16.msra.mxu0 %v429
    %452 = vmatprep.subr.bf16.mxu0 0
    %453 = vmatpush1.bf16.msra.mxu0 %v430
    %454 = vmatprep.subr.bf16.mxu0 0
    %455 = vmatpush1.bf16.msra.mxu0 %v431
    %456 = vmatprep.subr.bf16.mxu0 0
    %457 = vmatpush1.bf16.msra.mxu0 0
    %458 = vmatprep.subr.bf16.mxu0 0
    %459 = vmatpush1.bf16.msra.mxu0 0
    %460 = vmatprep.subr.bf16.mxu0 0
    %461 = vmatpush1.bf16.msra.mxu0 0
    %462 = vmatprep.subr.bf16.mxu0 0
    %463 = vmatpush1.bf16.msra.mxu0 0
    %464 = vmatprep.subr.bf16.mxu0 0
    %465 = vmatpush1.bf16.msra.mxu0 0
    %466 = vmatprep.subr.bf16.mxu0 0
    %467 = vmatpush1.bf16.msra.mxu0 0
    %468 = vmatprep.subr.bf16.mxu0 0
    %469 = vmatpush1.bf16.msra.mxu0 0
    %470 = vmatprep.subr.bf16.mxu0 0
    %471 = vmatpush1.bf16.msra.mxu0 0
    %472 = vmatprep.mubr.bf16.mxu0 0
    %473 = vmatmul.mubr.bf16.gmra.mrb[0].mxu0 %v368
    %v474 = vpop.f32.mrb[0].mxu0
    %v475 = vadd.f32 %v390, %v474
    %v476 = vpop.f32.mrb[0].mxu0
    %v477 = vpop.f32.mrb[0].mxu0
    %v478 = vpop.f32.mrb[0].mxu0
    %479 = vdwg.mxu0
    %vm480 = vcmp.ge.f32.partialorder %v475, 0.0
    %v481 = vmul.f32 %v475, 0.01
    %v482 = vsel %vm480, %v475, %v481
    %v483 = vpack.c.bf16 %v482, %v482
    %v484 = vld [vmem:[#allocation9] sm:$0xf]
    %v485 = vld [vmem:[#allocation9 + $0x4] sm:$0xf]
    %v486 = vld [vmem:[#allocation9 + $0x8] sm:$0xf]
    %v487 = vld [vmem:[#allocation9 + $0xc] sm:$0xf]
    %v488 = vld [vmem:[#allocation9 + $0x10] sm:$0xf]
    %v489 = vld [vmem:[#allocation9 + $0x14] sm:$0xf]
    %v490 = vld [vmem:[#allocation9 + $0x18] sm:$0xf]
    %v491 = vld [vmem:[#allocation9 + $0x1c] sm:$0xf]
    %v492 = vld [vmem:[#allocation9 + $0x20] sm:$0xf]
    %v493 = vld [vmem:[#allocation9 + $0x24] sm:$0xf]
    %v494 = vld [vmem:[#allocation9 + $0x28] sm:$0xf]
    %v495 = vld [vmem:[#allocation9 + $0x2c] sm:$0xf]
    %v496 = vld [vmem:[#allocation9 + $0x30] sm:$0xf]
    %v497 = vld [vmem:[#allocation9 + $0x34] sm:$0xf]
    %v498 = vld [vmem:[#allocation9 + $0x38] sm:$0xf]
    %v499 = vld [vmem:[#allocation9 + $0x3c] sm:$0xf]
    %v500 = vld [vmem:[%s8] sm:$0x1]
    %v502 = vlaneseq
    %v503 = vshrl.u32 %v502, 7
    %v504 = vsub.s32 0, %v503
    %v505 = vrot.slane %v500, %v504
    %v523 = vunpack.c.l.b16 %v484
    %v524 = vunpack.c.l.b16 %v485
    %v525 = vunpack.c.l.b16 %v486
    %v526 = vunpack.c.l.b16 %v487
    %v527 = vunpack.c.l.b16 %v488
    %v528 = vunpack.c.l.b16 %v489
    %v529 = vunpack.c.l.b16 %v490
    %v530 = vunpack.c.l.b16 %v491
    %v531 = vunpack.c.l.b16 %v492
    %v532 = vunpack.c.l.b16 %v493
    %v533 = vunpack.c.l.b16 %v494
    %v534 = vunpack.c.l.b16 %v495
    %v535 = vunpack.c.l.b16 %v496
    %v536 = vunpack.c.l.b16 %v497
    %v537 = vunpack.c.l.b16 %v498
    %v538 = vunpack.c.l.b16 %v499
    %v539 = vpack.c.b16 %v524, %v523
    %v540 = vpack.c.b16 %v526, %v525
    %v541 = vpack.c.b16 %v528, %v527
    %v542 = vpack.c.b16 %v530, %v529
    %v543 = vpack.c.b16 %v532, %v531
    %v544 = vpack.c.b16 %v534, %v533
    %v545 = vpack.c.b16 %v536, %v535
    %v546 = vpack.c.b16 %v538, %v537
    %555 = vmatprep.subr.bf16.mxu0 0
    %556 = vmatpush1.bf16.msra.mxu0 %v539
    %557 = vmatprep.subr.bf16.mxu0 0
    %558 = vmatpush1.bf16.msra.mxu0 %v540
    %559 = vmatprep.subr.bf16.mxu0 0
    %560 = vmatpush1.bf16.msra.mxu0 %v541
    %561 = vmatprep.subr.bf16.mxu0 0
    %562 = vmatpush1.bf16.msra.mxu0 %v542
    %563 = vmatprep.subr.bf16.mxu0 0
    %564 = vmatpush1.bf16.msra.mxu0 %v543
    %565 = vmatprep.subr.bf16.mxu0 0
    %566 = vmatpush1.bf16.msra.mxu0 %v544
    %567 = vmatprep.subr.bf16.mxu0 0
    %568 = vmatpush1.bf16.msra.mxu0 %v545
    %569 = vmatprep.subr.bf16.mxu0 0
    %570 = vmatpush1.bf16.msra.mxu0 %v546
    %571 = vmatprep.subr.bf16.mxu0 0
    %572 = vmatpush1.bf16.msra.mxu0 0
    %573 = vmatprep.subr.bf16.mxu0 0
    %574 = vmatpush1.bf16.msra.mxu0 0
    %575 = vmatprep.subr.bf16.mxu0 0
    %576 = vmatpush1.bf16.msra.mxu0 0
    %577 = vmatprep.subr.bf16.mxu0 0
    %578 = vmatpush1.bf16.msra.mxu0 0
    %579 = vmatprep.subr.bf16.mxu0 0
    %580 = vmatpush1.bf16.msra.mxu0 0
    %581 = vmatprep.subr.bf16.mxu0 0
    %582 = vmatpush1.bf16.msra.mxu0 0
    %583 = vmatprep.subr.bf16.mxu0 0
    %584 = vmatpush1.bf16.msra.mxu0 0
    %585 = vmatprep.subr.bf16.mxu0 0
    %586 = vmatpush1.bf16.msra.mxu0 0
    %587 = vmatprep.mubr.bf16.mxu0 0
    %588 = vmatmul.mubr.bf16.gmra.mrb[0].mxu0 %v483
    %v589 = vpop.f32.mrb[0].mxu0
    %v590 = vadd.f32 %v505, %v589
    %v591 = vpop.f32.mrb[0].mxu0
    %v592 = vpop.f32.mrb[0].mxu0
    %v593 = vpop.f32.mrb[0].mxu0
    %594 = vdwg.mxu0
    %vm595 = vcmp.ge.f32.partialorder %v590, 0.0
    %v596 = vmul.f32 %v590, 0.01
    %v597 = vsel %vm595, %v590, %v596
    %v598 = vpack.c.bf16 %v597, %v597
    %v599 = vld [vmem:[#allocation10] sm:$0xf]
    %v600 = vld [vmem:[#allocation10 + $0x4] sm:$0xf]
    %v601 = vld [vmem:[#allocation10 + $0x8] sm:$0xf]
    %v602 = vld [vmem:[#allocation10 + $0xc] sm:$0xf]
    %v603 = vld [vmem:[#allocation10 + $0x10] sm:$0xf]
    %v604 = vld [vmem:[#allocation10 + $0x14] sm:$0xf]
    %v605 = vld [vmem:[#allocation10 + $0x18] sm:$0xf]
    %v606 = vld [vmem:[#allocation10 + $0x1c] sm:$0xf]
    %v607 = vld [vmem:[#allocation10 + $0x20] sm:$0xf]
    %v608 = vld [vmem:[#allocation10 + $0x24] sm:$0xf]
    %v609 = vld [vmem:[#allocation10 + $0x28] sm:$0xf]
    %v610 = vld [vmem:[#allocation10 + $0x2c] sm:$0xf]
    %v611 = vld [vmem:[#allocation10 + $0x30] sm:$0xf]
    %v612 = vld [vmem:[#allocation10 + $0x34] sm:$0xf]
    %v613 = vld [vmem:[#allocation10 + $0x38] sm:$0xf]
    %v614 = vld [vmem:[#allocation10 + $0x3c] sm:$0xf]
    %v615 = vld [vmem:[%s10] sm:$0x1]
    %v617 = vlaneseq
    %v618 = vshrl.u32 %v617, 7
    %v619 = vsub.s32 0, %v618
    %v620 = vrot.slane %v615, %v619
    %v638 = vunpack.c.l.b16 %v599
    %v639 = vunpack.c.l.b16 %v600
    %v640 = vunpack.c.l.b16 %v601
    %v641 = vunpack.c.l.b16 %v602
    %v642 = vunpack.c.l.b16 %v603
    %v643 = vunpack.c.l.b16 %v604
    %v644 = vunpack.c.l.b16 %v605
    %v645 = vunpack.c.l.b16 %v606
    %v646 = vunpack.c.l.b16 %v607
    %v647 = vunpack.c.l.b16 %v608
    %v648 = vunpack.c.l.b16 %v609
    %v649 = vunpack.c.l.b16 %v610
    %v650 = vunpack.c.l.b16 %v611
    %v651 = vunpack.c.l.b16 %v612
    %v652 = vunpack.c.l.b16 %v613
    %v653 = vunpack.c.l.b16 %v614
    %v654 = vpack.c.b16 %v639, %v638
    %v655 = vpack.c.b16 %v641, %v640
    %v656 = vpack.c.b16 %v643, %v642
    %v657 = vpack.c.b16 %v645, %v644
    %v658 = vpack.c.b16 %v647, %v646
    %v659 = vpack.c.b16 %v649, %v648
    %v660 = vpack.c.b16 %v651, %v650
    %v661 = vpack.c.b16 %v653, %v652
    %670 = vmatprep.subr.bf16.mxu0 0
    %671 = vmatpush1.bf16.msra.mxu0 %v654
    %672 = vmatprep.subr.bf16.mxu0 0
    %673 = vmatpush1.bf16.msra.mxu0 %v655
    %674 = vmatprep.subr.bf16.mxu0 0
    %675 = vmatpush1.bf16.msra.mxu0 %v656
    %676 = vmatprep.subr.bf16.mxu0 0
    %677 = vmatpush1.bf16.msra.mxu0 %v657
    %678 = vmatprep.subr.bf16.mxu0 0
    %679 = vmatpush1.bf16.msra.mxu0 %v658
    %680 = vmatprep.subr.bf16.mxu0 0
    %681 = vmatpush1.bf16.msra.mxu0 %v659
    %682 = vmatprep.subr.bf16.mxu0 0
    %683 = vmatpush1.bf16.msra.mxu0 %v660
    %684 = vmatprep.subr.bf16.mxu0 0
    %685 = vmatpush1.bf16.msra.mxu0 %v661
    %686 = vmatprep.subr.bf16.mxu0 0
    %687 = vmatpush1.bf16.msra.mxu0 0
    %688 = vmatprep.subr.bf16.mxu0 0
    %689 = vmatpush1.bf16.msra.mxu0 0
    %690 = vmatprep.subr.bf16.mxu0 0
    %691 = vmatpush1.bf16.msra.mxu0 0
    %692 = vmatprep.subr.bf16.mxu0 0
    %693 = vmatpush1.bf16.msra.mxu0 0
    %694 = vmatprep.subr.bf16.mxu0 0
    %695 = vmatpush1.bf16.msra.mxu0 0
    %696 = vmatprep.subr.bf16.mxu0 0
    %697 = vmatpush1.bf16.msra.mxu0 0
    %698 = vmatprep.subr.bf16.mxu0 0
    %699 = vmatpush1.bf16.msra.mxu0 0
    %700 = vmatprep.subr.bf16.mxu0 0
    %701 = vmatpush1.bf16.msra.mxu0 0
    %702 = vmatprep.mubr.bf16.mxu0 0
    %703 = vmatmul.mubr.bf16.gmra.mrb[0].mxu0 %v598
    %v704 = vpop.f32.mrb[0].mxu0
    %v705 = vadd.f32 %v620, %v704
    %v706 = vpop.f32.mrb[0].mxu0
    %v707 = vpop.f32.mrb[0].mxu0
    %v708 = vpop.f32.mrb[0].mxu0
    %709 = vdwg.mxu0
    %vm710 = vcmp.ge.f32.partialorder %v705, 0.0
    %v711 = vmul.f32 %v705, 0.01
    %v712 = vsel %vm710, %v705, %v711
    %v713 = vpack.c.bf16 %v712, %v712
    %v714 = vld [vmem:[#allocation12] sm:$0xf]
    %v715 = vld [vmem:[#allocation12 + $0x4] sm:$0xf]
    %v716 = vld [vmem:[#allocation12 + $0x8] sm:$0xf]
    %v717 = vld [vmem:[#allocation12 + $0xc] sm:$0xf]
    %v718 = vld [vmem:[#allocation12 + $0x10] sm:$0xf]
    %v719 = vld [vmem:[#allocation12 + $0x14] sm:$0xf]
    %v720 = vld [vmem:[#allocation12 + $0x18] sm:$0xf]
    %v721 = vld [vmem:[#allocation12 + $0x1c] sm:$0xf]
    %v722 = vld [vmem:[#allocation12 + $0x20] sm:$0xf]
    %v723 = vld [vmem:[#allocation12 + $0x24] sm:$0xf]
    %v724 = vld [vmem:[#allocation12 + $0x28] sm:$0xf]
    %v725 = vld [vmem:[#allocation12 + $0x2c] sm:$0xf]
    %v726 = vld [vmem:[#allocation12 + $0x30] sm:$0xf]
    %v727 = vld [vmem:[#allocation12 + $0x34] sm:$0xf]
    %v728 = vld [vmem:[#allocation12 + $0x38] sm:$0xf]
    %v729 = vld [vmem:[#allocation12 + $0x3c] sm:$0xf]
    %v730 = vld [vmem:[%s12] sm:$0x1]
    %v732 = vlaneseq
    %v733 = vshrl.u32 %v732, 7
    %v734 = vsub.s32 0, %v733
    %v735 = vrot.slane %v730, %v734
    %v753 = vunpack.c.l.b16 %v714
    %v754 = vunpack.c.l.b16 %v715
    %v755 = vunpack.c.l.b16 %v716
    %v756 = vunpack.c.l.b16 %v717
    %v757 = vunpack.c.l.b16 %v718
    %v758 = vunpack.c.l.b16 %v719
    %v759 = vunpack.c.l.b16 %v720
    %v760 = vunpack.c.l.b16 %v721
    %v761 = vunpack.c.l.b16 %v722
    %v762 = vunpack.c.l.b16 %v723
    %v763 = vunpack.c.l.b16 %v724
    %v764 = vunpack.c.l.b16 %v725
    %v765 = vunpack.c.l.b16 %v726
    %v766 = vunpack.c.l.b16 %v727
    %v767 = vunpack.c.l.b16 %v728
    %v768 = vunpack.c.l.b16 %v729
    %v769 = vpack.c.b16 %v754, %v753
    %v770 = vpack.c.b16 %v756, %v755
    %v771 = vpack.c.b16 %v758, %v757
    %v772 = vpack.c.b16 %v760, %v759
    %v773 = vpack.c.b16 %v762, %v761
    %v774 = vpack.c.b16 %v764, %v763
    %v775 = vpack.c.b16 %v766, %v765
    %v776 = vpack.c.b16 %v768, %v767
    %785 = vmatprep.subr.bf16.mxu0 0
    %786 = vmatpush1.bf16.msra.mxu0 %v769
    %787 = vmatprep.subr.bf16.mxu0 0
    %788 = vmatpush1.bf16.msra.mxu0 %v770
    %789 = vmatprep.subr.bf16.mxu0 0
    %790 = vmatpush1.bf16.msra.mxu0 %v771
    %791 = vmatprep.subr.bf16.mxu0 0
    %792 = vmatpush1.bf16.msra.mxu0 %v772
    %793 = vmatprep.subr.bf16.mxu0 0
    %794 = vmatpush1.bf16.msra.mxu0 %v773
    %795 = vmatprep.subr.bf16.mxu0 0
    %796 = vmatpush1.bf16.msra.mxu0 %v774
    %797 = vmatprep.subr.bf16.mxu0 0
    %798 = vmatpush1.bf16.msra.mxu0 %v775
    %799 = vmatprep.subr.bf16.mxu0 0
    %800 = vmatpush1.bf16.msra.mxu0 %v776
    %801 = vmatprep.subr.bf16.mxu0 0
    %802 = vmatpush1.bf16.msra.mxu0 0
    %803 = vmatprep.subr.bf16.mxu0 0
    %804 = vmatpush1.bf16.msra.mxu0 0
    %805 = vmatprep.subr.bf16.mxu0 0
    %806 = vmatpush1.bf16.msra.mxu0 0
    %807 = vmatprep.subr.bf16.mxu0 0
    %808 = vmatpush1.bf16.msra.mxu0 0
    %809 = vmatprep.subr.bf16.mxu0 0
    %810 = vmatpush1.bf16.msra.mxu0 0
    %811 = vmatprep.subr.bf16.mxu0 0
    %812 = vmatpush1.bf16.msra.mxu0 0
    %813 = vmatprep.subr.bf16.mxu0 0
    %814 = vmatpush1.bf16.msra.mxu0 0
    %815 = vmatprep.subr.bf16.mxu0 0
    %816 = vmatpush1.bf16.msra.mxu0 0
    %817 = vmatprep.mubr.bf16.mxu0 0
    %818 = vmatmul.mubr.bf16.gmra.mrb[0].mxu0 %v713
    %v819 = vpop.f32.mrb[0].mxu0
    %v820 = vadd.f32 %v735, %v819
    %v821 = vpop.f32.mrb[0].mxu0
    %v822 = vpop.f32.mrb[0].mxu0
    %v823 = vpop.f32.mrb[0].mxu0
    %824 = vdwg.mxu0
    %vm825 = vcmp.ge.f32.partialorder %v820, 0.0
    %v826 = vmul.f32 %v820, 0.01
    %v827 = vsel %vm825, %v820, %v826
    %v828 = vpack.c.bf16 %v827, %v827
    %v829 = vld [vmem:[#allocation13] sm:$0xf]
    %v830 = vld [vmem:[#allocation13 + $0x4] sm:$0xf]
    %v831 = vld [vmem:[#allocation13 + $0x8] sm:$0xf]
    %v832 = vld [vmem:[#allocation13 + $0xc] sm:$0xf]
    %v833 = vld [vmem:[#allocation13 + $0x10] sm:$0xf]
    %v834 = vld [vmem:[#allocation13 + $0x14] sm:$0xf]
    %v835 = vld [vmem:[#allocation13 + $0x18] sm:$0xf]
    %v836 = vld [vmem:[#allocation13 + $0x1c] sm:$0xf]
    %v837 = vld [vmem:[#allocation13 + $0x20] sm:$0xf]
    %v838 = vld [vmem:[#allocation13 + $0x24] sm:$0xf]
    %v839 = vld [vmem:[#allocation13 + $0x28] sm:$0xf]
    %v840 = vld [vmem:[#allocation13 + $0x2c] sm:$0xf]
    %v841 = vld [vmem:[#allocation13 + $0x30] sm:$0xf]
    %v842 = vld [vmem:[#allocation13 + $0x34] sm:$0xf]
    %v843 = vld [vmem:[#allocation13 + $0x38] sm:$0xf]
    %v844 = vld [vmem:[#allocation13 + $0x3c] sm:$0xf]
    %v845 = vld [vmem:[%s14] sm:$0x1]
    %v847 = vlaneseq
    %v848 = vshrl.u32 %v847, 7
    %v849 = vsub.s32 0, %v848
    %v850 = vrot.slane %v845, %v849
    %v868 = vunpack.c.l.b16 %v829
    %v869 = vunpack.c.l.b16 %v830
    %v870 = vunpack.c.l.b16 %v831
    %v871 = vunpack.c.l.b16 %v832
    %v872 = vunpack.c.l.b16 %v833
    %v873 = vunpack.c.l.b16 %v834
    %v874 = vunpack.c.l.b16 %v835
    %v875 = vunpack.c.l.b16 %v836
    %v876 = vunpack.c.l.b16 %v837
    %v877 = vunpack.c.l.b16 %v838
    %v878 = vunpack.c.l.b16 %v839
    %v879 = vunpack.c.l.b16 %v840
    %v880 = vunpack.c.l.b16 %v841
    %v881 = vunpack.c.l.b16 %v842
    %v882 = vunpack.c.l.b16 %v843
    %v883 = vunpack.c.l.b16 %v844
    %v884 = vpack.c.b16 %v869, %v868
    %v885 = vpack.c.b16 %v871, %v870
    %v886 = vpack.c.b16 %v873, %v872
    %v887 = vpack.c.b16 %v875, %v874
    %v888 = vpack.c.b16 %v877, %v876
    %v889 = vpack.c.b16 %v879, %v878
    %v890 = vpack.c.b16 %v881, %v880
    %v891 = vpack.c.b16 %v883, %v882
    %900 = vmatprep.subr.bf16.mxu0 0
    %901 = vmatpush1.bf16.msra.mxu0 %v884
    %902 = vmatprep.subr.bf16.mxu0 0
    %903 = vmatpush1.bf16.msra.mxu0 %v885
    %904 = vmatprep.subr.bf16.mxu0 0
    %905 = vmatpush1.bf16.msra.mxu0 %v886
    %906 = vmatprep.subr.bf16.mxu0 0
    %907 = vmatpush1.bf16.msra.mxu0 %v887
    %908 = vmatprep.subr.bf16.mxu0 0
    %909 = vmatpush1.bf16.msra.mxu0 %v888
    %910 = vmatprep.subr.bf16.mxu0 0
    %911 = vmatpush1.bf16.msra.mxu0 %v889
    %912 = vmatprep.subr.bf16.mxu0 0
    %913 = vmatpush1.bf16.msra.mxu0 %v890
    %914 = vmatprep.subr.bf16.mxu0 0
    %915 = vmatpush1.bf16.msra.mxu0 %v891
    %916 = vmatprep.subr.bf16.mxu0 0
    %917 = vmatpush1.bf16.msra.mxu0 0
    %918 = vmatprep.subr.bf16.mxu0 0
    %919 = vmatpush1.bf16.msra.mxu0 0
    %920 = vmatprep.subr.bf16.mxu0 0
    %921 = vmatpush1.bf16.msra.mxu0 0
    %922 = vmatprep.subr.bf16.mxu0 0
    %923 = vmatpush1.bf16.msra.mxu0 0
    %924 = vmatprep.subr.bf16.mxu0 0
    %925 = vmatpush1.bf16.msra.mxu0 0
    %926 = vmatprep.subr.bf16.mxu0 0
    %927 = vmatpush1.bf16.msra.mxu0 0
    %928 = vmatprep.subr.bf16.mxu0 0
    %929 = vmatpush1.bf16.msra.mxu0 0
    %930 = vmatprep.subr.bf16.mxu0 0
    %931 = vmatpush1.bf16.msra.mxu0 0
    %932 = vmatprep.mubr.bf16.mxu0 0
    %933 = vmatmul.mubr.bf16.gmra.mrb[0].mxu0 %v828
    %v934 = vpop.f32.mrb[0].mxu0
    %v935 = vadd.f32 %v850, %v934
    %v936 = vpop.f32.mrb[0].mxu0
    %v937 = vpop.f32.mrb[0].mxu0
    %v938 = vpop.f32.mrb[0].mxu0
    %939 = vdwg.mxu0
    %v940 = vsub.f32 0.0, %v935
    %v941 = vmul.f32 %v940, 1.442695
    %v942 = vpow.pop %v941
    %v943 = vadd.f32 %v942, 1.0
    %v944 = vrcp.pop %v943
    %v945 = vmul.f32 1.0, %v944
    %vm946 = vcmask 7168
    %947 = vst.msk [vmem:[%s15] sm:$0xff] %vm946, %v945
    // Predicated region
    $region94: #{_bitpred_forward.1} parent=1 // pred_check
      _
    $region95: #{_bitpred_forward.1} parent=1 // pred_check_branch
      %949 = sbr.rel (0) target = $region97
    $region96: #{_bitpred_forward.1} parent=1 // pred_region
      _
    $region97: #{_bitpred_forward.1} parent=1 // pred_fallthru
      _
    // Predicated region
    $region98: #{_bitpred_forward.1} parent=1 // pred_check
      _
    $region99: #{_bitpred_forward.1} parent=1 // pred_check_branch
      %951 = sbr.rel (0) target = $region101
    $region100: #{_bitpred_forward.1} parent=1 // pred_region
      _
    $region101: #{_bitpred_forward.1} parent=1 // pred_fallthru
      _
    %952 = vsyncpa [#allocation3], 1
    %953 = vsyncpa [#allocation5], 1
    %954 = vsyncpa [#allocation8], 1
    %955 = vsyncpa [#allocation11], 1
    %956 = vsyncpa [#allocation14], 1

</llo_original>
